<compile_context>
chip_gen: v7x
topology: tpu7x:2x2x1
jax: 0.10.0
libtpu: 0.0.40
codegen_flags: <defaults>
</compile_context>

<pallas_src>
import functools
import math

import jax
import jax.numpy as jnp
from jax.experimental import pallas as pl
from jax.experimental.pallas import tpu as pltpu


HIDDEN = 256
N_ACTIONS = 3
HEAD_PAD = 128          # fused value|advantage head, zero-padded to 128 lanes
DEFAULT_BLOCK_B = 256   # MXU-friendly batch tile (clamped for small B)
VMEM_LIMIT_BYTES = 32 * 1024 * 1024


def _round_up(n, m):
    return ((n + m - 1) // m) * m


def _dueling_kernel(x_ref, w1_ref, b1_ref, w2_ref, b2_ref, wh_ref, bh_ref,
                    y_ref, adv_sum_ref, *, block_b, n_valid_rows):
    i = pl.program_id(0)
    nsteps = pl.num_programs(0)

    @pl.when(i == 0)
    def _init():
        adv_sum_ref[...] = jnp.zeros_like(adv_sum_ref)

    # --- trunk: two 256-wide layers, bf16 MXU operands, f32 accumulate ---
    x = x_ref[...].astype(jnp.bfloat16)
    h1 = jnp.dot(x, w1_ref[...], preferred_element_type=jnp.float32) + b1_ref[...]
    h1 = jnp.maximum(h1, 0.0)
    h2 = jnp.dot(h1.astype(jnp.bfloat16), w2_ref[...],
                 preferred_element_type=jnp.float32) + b2_ref[...]
    h2 = jnp.maximum(h2, 0.0)

    # --- fused heads: cols 0..2 = advantage, col 3 = value, cols 4..127 = 0 ---
    head = jnp.dot(h2.astype(jnp.bfloat16), wh_ref[...],
                   preferred_element_type=jnp.float32) + bh_ref[...]
    adv = head[:, 0:N_ACTIONS]                     # [block_b, 3]
    value = head[:, N_ACTIONS:N_ACTIONS + 1]       # [block_b, 1]

    # Global-mean bookkeeping: only rows belonging to the real batch count.
    row_ids = i * block_b + jax.lax.broadcasted_iota(jnp.int32, (block_b, 1), 0)
    adv_valid = jnp.where(row_ids < n_valid_rows, adv, 0.0)
    adv_sum_ref[...] += jnp.sum(adv_valid, keepdims=True)

    # Lane-dense store into the resident output slab: cols 0..2 hold value + adv;
    # cols 3..127 are garbage (sliced off by the wrapper).
    out_block = head + value
    row0 = pl.multiple_of(i * block_b, block_b)
    y_ref[pl.ds(row0, block_b), :] = out_block

    # Finalize: subtract the global advantage mean from the resident output.
    @pl.when(i == nsteps - 1)
    def _finalize():
        mean = adv_sum_ref[...] * (1.0 / float(n_valid_rows * N_ACTIONS))
        y_ref[...] = y_ref[...] - mean


def dueling_ddqn_forward(x, kernel_params, *, block_b=DEFAULT_BLOCK_B):
    """Run the Dueling DDQN forward pass with a batch-gridded Pallas kernel."""
    B, obs = x.shape
    w1, b1, w2, b2, wh, bh = kernel_params

    block_b = min(block_b, _round_up(B, 8))
    b_pad = _round_up(B, block_b)
    if b_pad != B:
        # Deterministic zero padding; padded rows are masked out of the adv mean
        # and sliced off the output.
        x = jnp.pad(x, ((0, b_pad - B), (0, 0)))

    # The whole (padded) output stays VMEM-resident so the last grid step can apply
    # the global mean (couples every batch block).
    # TODO(synk): for very large B (resident slab > ~VMEM budget), switch to a
    # reduce-then-combine split so the output can be tiled / megacore-parallelized.
    assert b_pad * HEAD_PAD * 4 <= VMEM_LIMIT_BYTES // 2, (
        "batch too large for the VMEM-resident output design")

    grid = (b_pad // block_b,)
    kernel = functools.partial(_dueling_kernel, block_b=block_b, n_valid_rows=B)
    const = lambda i: (0, 0)  # weights/biases/output: resident, DMA'd once

    y_pad = pl.pallas_call(
        kernel,
        out_shape=jax.ShapeDtypeStruct((b_pad, HEAD_PAD), jnp.float32),
        grid_spec=pltpu.PrefetchScalarGridSpec(
            num_scalar_prefetch=0,
            grid=grid,
            in_specs=[
                pl.BlockSpec((block_b, obs), lambda i: (i, 0)),   # x: tiled over batch
                pl.BlockSpec((obs, HIDDEN), const),               # W1 (bf16)
                pl.BlockSpec((1, HIDDEN), const),                 # b1 (f32)
                pl.BlockSpec((HIDDEN, HIDDEN), const),            # W2 (bf16)
                pl.BlockSpec((1, HIDDEN), const),                 # b2 (f32)
                pl.BlockSpec((HIDDEN, HEAD_PAD), const),          # fused head W (bf16)
                pl.BlockSpec((1, HEAD_PAD), const),               # fused head b (f32)
            ],
            out_specs=pl.BlockSpec((b_pad, HEAD_PAD), const),
            scratch_shapes=[pltpu.VMEM((1, 1), jnp.float32)],     # global adv sum
        ),
        compiler_params=pltpu.CompilerParams(
            # Must be "arbitrary": the global advantage mean couples all batch blocks.
            dimension_semantics=("arbitrary",),
            vmem_limit_bytes=VMEM_LIMIT_BYTES,
        ),
    )(x, w1, b1, w2, b2, wh, bh)

    return y_pad[:B, :N_ACTIONS]


# ------------------------- parameter construction -------------------------

def _init_linear(key, fan_in, fan_out):
    """PyTorch-style Linear init: U(-1/sqrt(fan_in), 1/sqrt(fan_in)).

    Returns weight pre-transposed as [fan_in, fan_out] and bias as [1, fan_out].
    """
    kw, kb = jax.random.split(key)
    bound = 1.0 / math.sqrt(fan_in)
    w = jax.random.uniform(kw, (fan_in, fan_out), jnp.float32, -bound, bound)
    b = jax.random.uniform(kb, (1, fan_out), jnp.float32, -bound, bound)
    return w, b


def init_params(key, obs_size):
    k1, k2, k3, k4, k5 = jax.random.split(key, 5)
    w1, b1 = _init_linear(k1, obs_size, HIDDEN)
    w2, b2 = _init_linear(k2, HIDDEN, HIDDEN)
    wv, bv = _init_linear(k3, HIDDEN, 1)
    wa, ba = _init_linear(k4, HIDDEN, N_ACTIONS)
    _wo, _bo = _init_linear(k5, HIDDEN, N_ACTIONS)  # `_out`: defined, unused in forward
    return (w1, b1, w2, b2, wv, bv, wa, ba)


def prepare_kernel_params(params):
    """Fuse + pad the heads and cast matmul weights to bf16 (biases stay f32)."""
    w1, b1, w2, b2, wv, bv, wa, ba = params
    wh = jnp.zeros((HIDDEN, HEAD_PAD), jnp.float32)
    wh = wh.at[:, 0:N_ACTIONS].set(wa).at[:, N_ACTIONS].set(wv[:, 0])
    bh = jnp.zeros((1, HEAD_PAD), jnp.float32)
    bh = bh.at[:, 0:N_ACTIONS].set(ba).at[:, N_ACTIONS].set(bv[0, 0])
    return (w1.astype(jnp.bfloat16), b1,
            w2.astype(jnp.bfloat16), b2,
            wh.astype(jnp.bfloat16), bh)


# ------------------------------ reference ---------------------------------

def _reference_forward(x, params):
    """Pure-JAX reference emulating the kernel's bf16-operand / f32-accumulate math."""
    w1, b1, w2, b2, wv, bv, wa, ba = params
    bf = jnp.bfloat16
    h1 = jnp.maximum(jnp.dot(x.astype(bf), w1.astype(bf),
                             preferred_element_type=jnp.float32) + b1, 0.0)
    h2 = jnp.maximum(jnp.dot(h1.astype(bf), w2.astype(bf),
                             preferred_element_type=jnp.float32) + b2, 0.0)
    value = jnp.dot(h2.astype(bf), wv.astype(bf),
                    preferred_element_type=jnp.float32) + bv
    adv = jnp.dot(h2.astype(bf), wa.astype(bf),
                  preferred_element_type=jnp.float32) + ba
    return value + adv - jnp.mean(adv)


if __name__ == "__main__":
    obs_size = 32
    batch = 8

    key = jax.random.PRNGKey(0)
    k_params, k_x, k_x2 = jax.random.split(key, 3)
    params = init_params(k_params, obs_size)
    kparams = prepare_kernel_params(params)

    # Main check: small batch (single grid step).
    x = jax.random.normal(k_x, (batch, obs_size), jnp.float32)
    y = jax.block_until_ready(dueling_ddqn_forward(x, kparams))
    y_ref = _reference_forward(x, params)
    assert y.shape == (batch, N_ACTIONS)
    assert jnp.allclose(y, y_ref, atol=1e-3, rtol=1e-3), "mismatch vs JAX reference (B=8)"

    # Second check: ragged batch with multiple grid steps (exercises the resident
    # output, the cross-block advantage-sum accumulator and the row mask).
    x2 = jax.random.normal(k_x2, (40, obs_size), jnp.float32)
    y2 = jax.block_until_ready(dueling_ddqn_forward(x2, kparams, block_b=16))
    y2_ref = _reference_forward(x2, params)
    assert y2.shape == (40, N_ACTIONS)
    assert jnp.allclose(y2, y2_ref, atol=1e-3, rtol=1e-3), "mismatch vs JAX reference (B=40)"

    print("KERNEL_OK")
</pallas_src>

<mosaic_0001>
module attributes {stable_mosaic.version = 11 : i64} {
  func.func @_dueling_kernel(%arg0: i32, %arg1: memref<8x32xf32, #tpu.memory_space<vmem>>, %arg2: memref<32x256xbf16, #tpu.memory_space<vmem>>, %arg3: memref<1x256xf32, #tpu.memory_space<vmem>>, %arg4: memref<256x256xbf16, #tpu.memory_space<vmem>>, %arg5: memref<1x256xf32, #tpu.memory_space<vmem>>, %arg6: memref<256x128xbf16, #tpu.memory_space<vmem>>, %arg7: memref<1x128xf32, #tpu.memory_space<vmem>>, %arg8: memref<8x128xf32, #tpu.memory_space<vmem>>, %arg9: memref<1x1xf32, #tpu.memory_space<vmem>>) attributes {dimension_semantics = [#tpu.dimension_semantics<arbitrary>], iteration_bounds = array<i64: 1>, scalar_prefetch = 0 : i64, scratch_operands = 1 : i64, tpu.core_type = #tpu.core_type<tc>, window_params = [{transform_indices = @transform_0, window_bounds = array<i64: 8, 32>}, {pipeline_mode = #tpu.pipeline_mode<synchronous>, transform_indices = @transform_1, window_bounds = array<i64: 32, 256>}, {pipeline_mode = #tpu.pipeline_mode<synchronous>, transform_indices = @transform_2, window_bounds = array<i64: 1, 256>}, {pipeline_mode = #tpu.pipeline_mode<synchronous>, transform_indices = @transform_3, window_bounds = array<i64: 256, 256>}, {pipeline_mode = #tpu.pipeline_mode<synchronous>, transform_indices = @transform_4, window_bounds = array<i64: 1, 256>}, {pipeline_mode = #tpu.pipeline_mode<synchronous>, transform_indices = @transform_5, window_bounds = array<i64: 256, 128>}, {pipeline_mode = #tpu.pipeline_mode<synchronous>, transform_indices = @transform_6, window_bounds = array<i64: 1, 128>}, {pipeline_mode = #tpu.pipeline_mode<synchronous>, transform_indices = @transform_7, window_bounds = array<i64: 8, 128>}]} {
    %c0_i32 = arith.constant 0 : i32
    %0 = arith.cmpi eq, %arg0, %c0_i32 : i32
    %1 = arith.extui %0 : i1 to i32
    %c0_i32_0 = arith.constant 0 : i32
    %2 = arith.cmpi ne, %1, %c0_i32_0 : i32
    scf.if %2 {
      %cst_29 = arith.constant 0.000000e+00 : f32
      %55 = vector.broadcast %cst_29 : f32 to vector<1x1xf32>
      %c0_30 = arith.constant 0 : index
      %c0_31 = arith.constant 0 : index
      %56 = vector.load %arg9[%c0_30, %c0_31] : memref<1x1xf32, #tpu.memory_space<vmem>>, vector<1x1xf32>
      tpu.vector_store %arg9[%c0_30, %c0_31], %55 {strides = array<i32>} : memref<1x1xf32, #tpu.memory_space<vmem>>, vector<1x1xf32>,
    } else {
    }
    %c0 = arith.constant 0 : index
    %c0_1 = arith.constant 0 : index
    %3 = vector.load %arg1[%c0, %c0_1] : memref<8x32xf32, #tpu.memory_space<vmem>>, vector<8x32xf32>
    %4 = arith.truncf %3 : vector<8x32xf32> to vector<8x32xbf16>
    %c0_2 = arith.constant 0 : index
    %c0_3 = arith.constant 0 : index
    %5 = vector.load %arg2[%c0_2, %c0_3] : memref<32x256xbf16, #tpu.memory_space<vmem>>, vector<32x256xbf16>
    %cst = arith.constant dense<0.000000e+00> : vector<8x256xf32>
    %6 = tpu.matmul %4, %5, %cst {dimension_numbers = #tpu.dot_dimension_numbers<[1], [0], [0], [1], [0, 0, 1, 1], [], []>} : vector<8x32xbf16>, vector<32x256xbf16>, vector<8x256xf32> -> vector<8x256xf32>
    %c0_4 = arith.constant 0 : index
    %c0_5 = arith.constant 0 : index
    %7 = vector.load %arg3[%c0_4, %c0_5] : memref<1x256xf32, #tpu.memory_space<vmem>>, vector<1x256xf32>
    %8 = vector.broadcast %7 : vector<1x256xf32> to vector<8x256xf32>
    %9 = arith.addf %6, %8 : vector<8x256xf32>
    %cst_6 = arith.constant 0.000000e+00 : f32
    %10 = vector.broadcast %cst_6 : f32 to vector<8x256xf32>
    %11 = arith.maximumf %9, %10 : vector<8x256xf32>
    %12 = arith.truncf %11 : vector<8x256xf32> to vector<8x256xbf16>
    %c0_7 = arith.constant 0 : index
    %c0_8 = arith.constant 0 : index
    %13 = vector.load %arg4[%c0_7, %c0_8] : memref<256x256xbf16, #tpu.memory_space<vmem>>, vector<256x256xbf16>
    %cst_9 = arith.constant dense<0.000000e+00> : vector<8x256xf32>
    %14 = tpu.matmul %12, %13, %cst_9 {dimension_numbers = #tpu.dot_dimension_numbers<[1], [0], [0], [1], [0, 0, 1, 1], [], []>} : vector<8x256xbf16>, vector<256x256xbf16>, vector<8x256xf32> -> vector<8x256xf32>
    %c0_10 = arith.constant 0 : index
    %c0_11 = arith.constant 0 : index
    %15 = vector.load %arg5[%c0_10, %c0_11] : memref<1x256xf32, #tpu.memory_space<vmem>>, vector<1x256xf32>
    %16 = vector.broadcast %15 : vector<1x256xf32> to vector<8x256xf32>
    %17 = arith.addf %14, %16 : vector<8x256xf32>
    %cst_12 = arith.constant 0.000000e+00 : f32
    %18 = vector.broadcast %cst_12 : f32 to vector<8x256xf32>
    %19 = arith.maximumf %17, %18 : vector<8x256xf32>
    %20 = arith.truncf %19 : vector<8x256xf32> to vector<8x256xbf16>
    %c0_13 = arith.constant 0 : index
    %c0_14 = arith.constant 0 : index
    %21 = vector.load %arg6[%c0_13, %c0_14] : memref<256x128xbf16, #tpu.memory_space<vmem>>, vector<256x128xbf16>
    %cst_15 = arith.constant dense<0.000000e+00> : vector<8x128xf32>
    %22 = tpu.matmul %20, %21, %cst_15 {dimension_numbers = #tpu.dot_dimension_numbers<[1], [0], [0], [1], [0, 0, 1, 1], [], []>} : vector<8x256xbf16>, vector<256x128xbf16>, vector<8x128xf32> -> vector<8x128xf32>
    %c0_16 = arith.constant 0 : index
    %c0_17 = arith.constant 0 : index
    %23 = vector.load %arg7[%c0_16, %c0_17] : memref<1x128xf32, #tpu.memory_space<vmem>>, vector<1x128xf32>
    %24 = vector.broadcast %23 : vector<1x128xf32> to vector<8x128xf32>
    %25 = arith.addf %22, %24 : vector<8x128xf32>
    %26 = vector.extract_strided_slice %25 {offsets = [0, 0], sizes = [8, 3], strides = [1, 1]} : vector<8x128xf32> to vector<8x3xf32>
    %27 = vector.extract_strided_slice %25 {offsets = [0, 3], sizes = [8, 1], strides = [1, 1]} : vector<8x128xf32> to vector<8x1xf32>
    %c8_i32 = arith.constant 8 : i32
    %28 = arith.muli %arg0, %c8_i32 : i32
    %29 = tpu.iota {dimensions = array<i32: 0>} : vector<8x1xi32>
    %30 = vector.broadcast %28 : i32 to vector<8x1xi32>
    %31 = arith.addi %30, %29 : vector<8x1xi32>
    %c8_i32_18 = arith.constant 8 : i32
    %32 = vector.broadcast %c8_i32_18 : i32 to vector<8x1xi32>
    %33 = arith.cmpi slt, %31, %32 : vector<8x1xi32>
    %cst_19 = arith.constant 0.000000e+00 : f32
    %34 = vector.shape_cast %33 : vector<8x1xi1> to vector<8x1xi1>
    %35 = vector.broadcast %34 : vector<8x1xi1> to vector<8x3xi1>
    %36 = vector.broadcast %cst_19 : f32 to vector<8x3xf32>
    %37 = arith.select %35, %26, %36 : vector<8x3xi1>, vector<8x3xf32>
    %c0_20 = arith.constant 0 : index
    %c0_21 = arith.constant 0 : index
    %38 = vector.load %arg9[%c0_20, %c0_21] : memref<1x1xf32, #tpu.memory_space<vmem>>, vector<1x1xf32>
    %39 = vector.shape_cast %37 : vector<8x3xf32> to vector<1x8x3xf32>
    %cst_22 = arith.constant dense<0.000000e+00> : vector<1xf32>
    %40 = vector.multi_reduction <add>, %39, %cst_22 [1, 2] : vector<1x8x3xf32> to vector<1xf32>
    %41 = vector.shape_cast %40 : vector<1xf32> to vector<1x1x1xf32>
    %42 = vector.extract %41[0, 0, 0] : f32 from vector<1x1x1xf32>
    %43 = vector.broadcast %42 : f32 to vector<1x1xf32>
    %44 = arith.addf %38, %43 : vector<1x1xf32>
    %c0_23 = arith.constant 0 : index
    %c0_24 = arith.constant 0 : index
    %45 = vector.load %arg9[%c0_23, %c0_24] : memref<1x1xf32, #tpu.memory_space<vmem>>, vector<1x1xf32>
    tpu.vector_store %arg9[%c0_23, %c0_24], %44 {strides = array<i32>} : memref<1x1xf32, #tpu.memory_space<vmem>>, vector<1x1xf32>,
    %46 = vector.broadcast %27 : vector<8x1xf32> to vector<8x128xf32>
    %47 = arith.addf %25, %46 : vector<8x128xf32>
    %c8_i32_25 = arith.constant 8 : i32
    %48 = arith.muli %arg0, %c8_i32_25 : i32
    %49 = tpu.assume_multiple %48, 8 : i32
    %50 = arith.index_cast %49 : i32 to index
    %c0_26 = arith.constant 0 : index
    %51 = vector.load %arg8[%50, %c0_26] : memref<8x128xf32, #tpu.memory_space<vmem>>, vector<8x128xf32>
    tpu.vector_store %arg8[%50, %c0_26], %47 {strides = array<i32>} : memref<8x128xf32, #tpu.memory_space<vmem>>, vector<8x128xf32>,
    %c0_i32_27 = arith.constant 0 : i32
    %52 = arith.cmpi eq, %arg0, %c0_i32_27 : i32
    %53 = arith.extui %52 : i1 to i32
    %c0_i32_28 = arith.constant 0 : i32
    %54 = arith.cmpi ne, %53, %c0_i32_28 : i32
    scf.if %54 {
      %c0_29 = arith.constant 0 : index
      %c0_30 = arith.constant 0 : index
      %55 = vector.load %arg9[%c0_29, %c0_30] : memref<1x1xf32, #tpu.memory_space<vmem>>, vector<1x1xf32>
      %cst_31 = arith.constant 0.0416666679 : f32
      %56 = vector.broadcast %cst_31 : f32 to vector<1x1xf32>
      %57 = arith.mulf %55, %56 : vector<1x1xf32>
      %c0_32 = arith.constant 0 : index
      %c0_33 = arith.constant 0 : index
      %58 = vector.load %arg8[%c0_32, %c0_33] : memref<8x128xf32, #tpu.memory_space<vmem>>, vector<8x128xf32>
      %59 = vector.broadcast %57 : vector<1x1xf32> to vector<8x128xf32>
      %60 = arith.subf %58, %59 : vector<8x128xf32>
      %c0_34 = arith.constant 0 : index
      %c0_35 = arith.constant 0 : index
      %61 = vector.load %arg8[%c0_34, %c0_35] : memref<8x128xf32, #tpu.memory_space<vmem>>, vector<8x128xf32>
      tpu.vector_store %arg8[%c0_34, %c0_35], %60 {strides = array<i32>} : memref<8x128xf32, #tpu.memory_space<vmem>>, vector<8x128xf32>,
    } else {
    }
    return
  }
  func.func @transform_0(%arg0: i32) -> (i32, i32) {
    %c0_i32 = arith.constant 0 : i32
    %c0_i32_0 = arith.constant 0 : i32
    return %arg0, %c0_i32 : i32, i32
  }
  func.func @transform_1(%arg0: i32) -> (i32, i32) {
    %c0_i32 = arith.constant 0 : i32
    %c0_i32_0 = arith.constant 0 : i32
    %c0_i32_1 = arith.constant 0 : i32
    return %c0_i32, %c0_i32_0 : i32, i32
  }
  func.func @transform_2(%arg0: i32) -> (i32, i32) {
    %c0_i32 = arith.constant 0 : i32
    %c0_i32_0 = arith.constant 0 : i32
    %c0_i32_1 = arith.constant 0 : i32
    return %c0_i32, %c0_i32_0 : i32, i32
  }
  func.func @transform_3(%arg0: i32) -> (i32, i32) {
    %c0_i32 = arith.constant 0 : i32
    %c0_i32_0 = arith.constant 0 : i32
    %c0_i32_1 = arith.constant 0 : i32
    return %c0_i32, %c0_i32_0 : i32, i32
  }
  func.func @transform_4(%arg0: i32) -> (i32, i32) {
    %c0_i32 = arith.constant 0 : i32
    %c0_i32_0 = arith.constant 0 : i32
    %c0_i32_1 = arith.constant 0 : i32
    return %c0_i32, %c0_i32_0 : i32, i32
  }
  func.func @transform_5(%arg0: i32) -> (i32, i32) {
    %c0_i32 = arith.constant 0 : i32
    %c0_i32_0 = arith.constant 0 : i32
    %c0_i32_1 = arith.constant 0 : i32
    return %c0_i32, %c0_i32_0 : i32, i32
  }
  func.func @transform_6(%arg0: i32) -> (i32, i32) {
    %c0_i32 = arith.constant 0 : i32
    %c0_i32_0 = arith.constant 0 : i32
    %c0_i32_1 = arith.constant 0 : i32
    return %c0_i32, %c0_i32_0 : i32, i32
  }
  func.func @transform_7(%arg0: i32) -> (i32, i32) {
    %c0_i32 = arith.constant 0 : i32
    %c0_i32_0 = arith.constant 0 : i32
    %c0_i32_1 = arith.constant 0 : i32
    return %c0_i32, %c0_i32_0 : i32, i32
  }
}

</mosaic_0001>

<llo_original>
// kernel: tpu_custom_call.1
$region0: #{tpu_custom_call.1}
  #allocation0 [shape = 'u32[]', space=smem, size = 0x4, offset = 0x4, fixed_abs, tag = 'smem constant byte address 0x4 - core index']
  #allocation1 [shape = 'u32[144,128]{1,0:T(1,128)}', space=vmem, size = 0x12000, scoped, tag = 'internal scratch']
  #allocation2 [shape = 'f32[1,1]{1,0:T(1,128)}', space=vmem, size = 0x200, scoped, tag = 'scratch operand']
  %s0 = inlined_call_operand.hbm [shape: f32[8,32], index: 0, kind: input, shape index: {}]
  %s1 = inlined_call_operand.hbm [shape: bf16[32,256], index: 1, kind: input, shape index: {}]
  %s2 = inlined_call_operand.vmem [shape: f32[1,256], index: 2, kind: input, shape index: {}]
  %s3 = inlined_call_operand.hbm [shape: bf16[256,256], index: 3, kind: input, shape index: {}]
  %s4 = inlined_call_operand.vmem [shape: f32[1,256], index: 4, kind: input, shape index: {}]
  %s5 = inlined_call_operand.hbm [shape: bf16[256,128], index: 5, kind: input, shape index: {}]
  %s6 = inlined_call_operand.vmem [shape: f32[1,128], index: 6, kind: input, shape index: {}]
  %s7 = inlined_call_operand.hbm [shape: f32[8,128], index: 7, kind: output, shape index: {}]
  %s8 = sld [smem:[#allocation0]]
  $region62: #{tpu_custom_call.1} parent=0
    _
  %s10 = ssub.s32 1, %s8
  %s11 = scalar_select 0, %s10, %s8
  $region1: #{tpu_custom_call.1} parent=0
    #allocation3 [shape = 'u8[4096]{0}', space=vmem, size = 0x1000, scoped, tag = 'input window, operand 0, single buffered']
    #allocation4 [shape = 's32[1]{0}', space=sflag, size = 0x4, scoped, tag = 'scoped memory for tpu_custom_call.1']
    #allocation5 [shape = 's32[1]{0}', space=sflag, size = 0x4, scoped, tag = 'scoped memory for tpu_custom_call.1']
    #allocation6 [shape = 'u8[16384]{0}', space=vmem, size = 0x4000, scoped, tag = 'input window, operand 1, single buffered']
    #allocation7 [shape = 's32[1]{0}', space=sflag, size = 0x4, scoped, tag = 'scoped memory for tpu_custom_call.1']
    #allocation8 [shape = 'u8[131072]{0}', space=vmem, size = 0x20000, scoped, tag = 'input window, operand 3, single buffered']
    #allocation9 [shape = 'u8[65536]{0}', space=vmem, size = 0x10000, scoped, tag = 'input window, operand 5, single buffered']
    #allocation10 [shape = 's32[1]{0}', space=sflag, size = 0x4, scoped, tag = 'scoped memory for tpu_custom_call.1']
    #allocation11 [shape = 'u8[4096]{0}', space=vmem, size = 0x1000, scoped, tag = 'output window, operand 0, single buffered']
    %12 = vsyncpa [#allocation4], 0
    %13 = vsyncpa [#allocation7], 0
    %14 = vsyncpa [#allocation10], 0
    %15 = vsyncpa [#allocation5], 0
    // Predicated region
    $region2: #{tpu_custom_call.1} parent=1 // pred_check
      _
    $region3: #{tpu_custom_call.1} parent=1 // pred_check_branch
      %17 = sbr.rel (0) target = $region5
    $region4: #{tpu_custom_call.1} parent=1 // pred_region
      %s19 = ssub.s32 128, 128
      %20 = vsyncadd [#allocation4], %s19
      %s22 = sshll.u32 [#allocation3], 4
      %s23 = int_to_ptr.vmem [resolvable:$true] %s22
      %25 = dma.hbm_to_vmem [thread:$0]  %s0, 128, %s23, [#allocation4]
    $region5: #{tpu_custom_call.1} parent=1 // pred_fallthru
      _
    // Predicated region
    $region6: #{tpu_custom_call.1} parent=1 // pred_check
      _
    $region7: #{tpu_custom_call.1} parent=1 // pred_check_branch
      %27 = sbr.rel (0) target = $region9
    $region8: #{tpu_custom_call.1} parent=1 // pred_region
      %s29 = ssub.s32 512, 512
      %30 = vsyncadd [#allocation7], %s29
      %s31 = sshll.u32 [#allocation6], 4
      %s32 = int_to_ptr.vmem [resolvable:$true] %s31
      %37 = dma.hbm_to_vmem [thread:$0]  %s1, 512, %s32, [#allocation7], 128, 128, 8
    $region9: #{tpu_custom_call.1} parent=1 // pred_fallthru
      _
    // Predicated region
    $region10: #{tpu_custom_call.1} parent=1 // pred_check
      _
    $region11: #{tpu_custom_call.1} parent=1 // pred_check_branch
      %39 = sbr.rel (0) target = $region13
    $region12: #{tpu_custom_call.1} parent=1 // pred_region
      _
    $region13: #{tpu_custom_call.1} parent=1 // pred_fallthru
      _
    // Predicated region
    $region14: #{tpu_custom_call.1} parent=1 // pred_check
      _
    $region15: #{tpu_custom_call.1} parent=1 // pred_check_branch
      %41 = sbr.rel (0) target = $region17
    $region16: #{tpu_custom_call.1} parent=1 // pred_region
      %s43 = ssub.s32 4096, 4096
      %44 = vsyncadd [#allocation7], %s43
      %s45 = sshll.u32 [#allocation8], 4
      %s46 = int_to_ptr.vmem [resolvable:$true] %s45
      %51 = dma.hbm_to_vmem [thread:$0]  %s3, 4096, %s46, [#allocation7], 128, 128, 8
    $region17: #{tpu_custom_call.1} parent=1 // pred_fallthru
      _
    // Predicated region
    $region18: #{tpu_custom_call.1} parent=1 // pred_check
      _
    $region19: #{tpu_custom_call.1} parent=1 // pred_check_branch
      %53 = sbr.rel (0) target = $region21
    $region20: #{tpu_custom_call.1} parent=1 // pred_region
      _
    $region21: #{tpu_custom_call.1} parent=1 // pred_fallthru
      _
    // Predicated region
    $region22: #{tpu_custom_call.1} parent=1 // pred_check
      _
    $region23: #{tpu_custom_call.1} parent=1 // pred_check_branch
      %55 = sbr.rel (0) target = $region25
    $region24: #{tpu_custom_call.1} parent=1 // pred_region
      %s57 = ssub.s32 2048, 2048
      %58 = vsyncadd [#allocation10], %s57
      %s59 = sshll.u32 [#allocation9], 4
      %s60 = int_to_ptr.vmem [resolvable:$true] %s59
      %65 = dma.hbm_to_vmem [thread:$0]  %s5, 2048, %s60, [#allocation10], 64, 64, 4
    $region25: #{tpu_custom_call.1} parent=1 // pred_fallthru
      _
    // Predicated region
    $region26: #{tpu_custom_call.1} parent=1 // pred_check
      _
    $region27: #{tpu_custom_call.1} parent=1 // pred_check_branch
      %67 = sbr.rel (0) target = $region29
    $region28: #{tpu_custom_call.1} parent=1 // pred_region
      _
    $region29: #{tpu_custom_call.1} parent=1 // pred_fallthru
      _
    // Predicated region
    $region30: #{tpu_custom_call.1} parent=1 // pred_check
      _
    $region31: #{tpu_custom_call.1} parent=1 // pred_check_branch
      %69 = sbr.rel (0) target = $region33
    $region32: #{tpu_custom_call.1} parent=1 // pred_region
      %70 = dma.done [#allocation4], 128
    $region33: #{tpu_custom_call.1} parent=1 // pred_fallthru
      _
    // Predicated region
    $region34: #{tpu_custom_call.1} parent=1 // pred_check
      _
    $region35: #{tpu_custom_call.1} parent=1 // pred_check_branch
      %72 = sbr.rel (0) target = $region37
    $region36: #{tpu_custom_call.1} parent=1 // pred_region
      %73 = dma.done [#allocation7], 512
    $region37: #{tpu_custom_call.1} parent=1 // pred_fallthru
      _
    // Predicated region
    $region38: #{tpu_custom_call.1} parent=1 // pred_check
      _
    $region39: #{tpu_custom_call.1} parent=1 // pred_check_branch
      %75 = sbr.rel (0) target = $region41
    $region40: #{tpu_custom_call.1} parent=1 // pred_region
      %76 = dma.done [#allocation7], 4096
    $region41: #{tpu_custom_call.1} parent=1 // pred_fallthru
      _
    // Predicated region
    $region42: #{tpu_custom_call.1} parent=1 // pred_check
      _
    $region43: #{tpu_custom_call.1} parent=1 // pred_check_branch
      %78 = sbr.rel (0) target = $region45
    $region44: #{tpu_custom_call.1} parent=1 // pred_region
      %79 = dma.done [#allocation10], 2048
    $region45: #{tpu_custom_call.1} parent=1 // pred_fallthru
      _
    %p81 = scmp.eq.s32.totalorder 0, 0
    // Predicated region
    $region46: #{tpu_custom_call.1} parent=1 // pred_check
      %p82 = pneg %p81
    $region47: #{tpu_custom_call.1} parent=1 // pred_check_branch
      %84 = sbr.rel (%p82) target = $region49
    $region48: #{tpu_custom_call.1} parent=1 // pred_region
      %vm85 = vcmask 0
      %86 = vst.msk [vmem:[#allocation2] sm:$0x1] %vm85, 0.0
    $region49: #{tpu_custom_call.1} parent=1 // pred_fallthru
      _
    %v87 = vld [vmem:[#allocation3] sm:$0xff]
    %v88 = vpack.c.bf16 %v87, %v87
    %v89 = vld [vmem:[#allocation6] sm:$0xff]
    %v90 = vld [vmem:[#allocation6 + $0x8] sm:$0xff]
    %v91 = vld [vmem:[#allocation6 + $0x10] sm:$0xff]
    %v92 = vld [vmem:[#allocation6 + $0x18] sm:$0xff]
    %v93 = vld [vmem:[%s2] sm:$0x3]
    %v95 = vlaneseq
    %v96 = vshrl.u32 %v95, 7
    %v97 = vsub.s32 0, %v96
    %v98 = vrot.slane %v93, %v97
    %v99 = vlaneseq
    %v100 = vshrl.u32 %v99, 7
    %v101 = vsub.s32 1, %v100
    %v102 = vrot.slane %v93, %v101
    %v109 = vunpack.c.l.b16 %v89
    %v110 = vunpack.c.h.b16 %v89
    %v111 = vunpack.c.l.b16 %v90
    %v112 = vunpack.c.h.b16 %v90
    %v113 = vunpack.c.l.b16 %v91
    %v114 = vunpack.c.h.b16 %v91
    %v115 = vunpack.c.l.b16 %v92
    %v116 = vunpack.c.h.b16 %v92
    %v117 = vpack.c.b16 %v111, %v109
    %v118 = vpack.c.b16 %v112, %v110
    %v119 = vpack.c.b16 %v115, %v113
    %v120 = vpack.c.b16 %v116, %v114
    %vm125 = vcmask 261120
    %v127 = vsel %vm125, %v88, 0
    %129 = vmatprep.subr.bf16.mxu0 %v118
    %130 = vmatpush1.bf16.msra.mxu0 %v117
    %131 = vmatprep.subr.bf16.mxu0 %v120
    %132 = vmatpush1.bf16.msra.mxu0 %v119
    %133 = vmatprep.subr.bf16.mxu0 0
    %134 = vmatpush1.bf16.msra.mxu0 0
    %135 = vmatprep.subr.bf16.mxu0 0
    %136 = vmatpush1.bf16.msra.mxu0 0
    %137 = vmatprep.subr.bf16.mxu0 0
    %138 = vmatpush1.bf16.msra.mxu0 0
    %139 = vmatprep.subr.bf16.mxu0 0
    %140 = vmatpush1.bf16.msra.mxu0 0
    %141 = vmatprep.subr.bf16.mxu0 0
    %142 = vmatpush1.bf16.msra.mxu0 0
    %143 = vmatprep.subr.bf16.mxu0 0
    %144 = vmatpush1.bf16.msra.mxu0 0
    %145 = vmatprep.subr.bf16.mxu0 0
    %146 = vmatpush1.bf16.msra.mxu0 0
    %147 = vmatprep.subr.bf16.mxu0 0
    %148 = vmatpush1.bf16.msra.mxu0 0
    %149 = vmatprep.subr.bf16.mxu0 0
    %150 = vmatpush1.bf16.msra.mxu0 0
    %151 = vmatprep.subr.bf16.mxu0 0
    %152 = vmatpush1.bf16.msra.mxu0 0
    %153 = vmatprep.subr.bf16.mxu0 0
    %154 = vmatpush1.bf16.msra.mxu0 0
    %155 = vmatprep.subr.bf16.mxu0 0
    %156 = vmatpush1.bf16.msra.mxu0 0
    %157 = vmatprep.subr.bf16.mxu0 0
    %158 = vmatpush1.bf16.msra.mxu0 0
    %159 = vmatprep.subr.bf16.mxu0 0
    %160 = vmatpush1.bf16.msra.mxu0 0
    %161 = vmatprep.mubr.bf16.mxu0 0
    %162 = vmatmul.mubr.bf16.gmra.mrb[0].mxu0 %v127
    %v163 = vpop.f32.mrb[0].mxu0
    %v164 = vadd.f32 %v98, %v163
    %v165 = vpop.f32.mrb[0].mxu0
    %v166 = vadd.f32 %v102, %v165
    %v167 = vpop.f32.mrb[0].mxu0
    %v168 = vpop.f32.mrb[0].mxu0
    %169 = vdwg.mxu0
    %v170 = vmax.f32 %v164, 0.0
    %v171 = vmax.f32 %v166, 0.0
    %v172 = vpack.c.bf16 %v170, %v170
    %v173 = vpack.c.bf16 %v171, %v171
    %v174 = vld [vmem:[#allocation8] sm:$0xff]
    %v175 = vld [vmem:[#allocation8 + $0x8] sm:$0xff]
    %v176 = vld [vmem:[#allocation8 + $0x10] sm:$0xff]
    %v177 = vld [vmem:[#allocation8 + $0x18] sm:$0xff]
    %v178 = vld [vmem:[#allocation8 + $0x20] sm:$0xff]
    %v179 = vld [vmem:[#allocation8 + $0x28] sm:$0xff]
    %v180 = vld [vmem:[#allocation8 + $0x30] sm:$0xff]
    %v181 = vld [vmem:[#allocation8 + $0x38] sm:$0xff]
    %v182 = vld [vmem:[#allocation8 + $0x40] sm:$0xff]
    %v183 = vld [vmem:[#allocation8 + $0x48] sm:$0xff]
    %v184 = vld [vmem:[#allocation8 + $0x50] sm:$0xff]
    %v185 = vld [vmem:[#allocation8 + $0x58] sm:$0xff]
    %v186 = vld [vmem:[#allocation8 + $0x60] sm:$0xff]
    %v187 = vld [vmem:[#allocation8 + $0x68] sm:$0xff]
    %v188 = vld [vmem:[#allocation8 + $0x70] sm:$0xff]
    %v189 = vld [vmem:[#allocation8 + $0x78] sm:$0xff]
    %v190 = vld [vmem:[#allocation8 + $0x80] sm:$0xff]
    %v191 = vld [vmem:[#allocation8 + $0x88] sm:$0xff]
    %v192 = vld [vmem:[#allocation8 + $0x90] sm:$0xff]
    %v193 = vld [vmem:[#allocation8 + $0x98] sm:$0xff]
    %v194 = vld [vmem:[#allocation8 + $0xa0] sm:$0xff]
    %v195 = vld [vmem:[#allocation8 + $0xa8] sm:$0xff]
    %v196 = vld [vmem:[#allocation8 + $0xb0] sm:$0xff]
    %v197 = vld [vmem:[#allocation8 + $0xb8] sm:$0xff]
    %v198 = vld [vmem:[#allocation8 + $0xc0] sm:$0xff]
    %v199 = vld [vmem:[#allocation8 + $0xc8] sm:$0xff]
    %v200 = vld [vmem:[#allocation8 + $0xd0] sm:$0xff]
    %v201 = vld [vmem:[#allocation8 + $0xd8] sm:$0xff]
    %v202 = vld [vmem:[#allocation8 + $0xe0] sm:$0xff]
    %v203 = vld [vmem:[#allocation8 + $0xe8] sm:$0xff]
    %v204 = vld [vmem:[#allocation8 + $0xf0] sm:$0xff]
    %v205 = vld [vmem:[#allocation8 + $0xf8] sm:$0xff]
    %v206 = vld [vmem:[%s4] sm:$0x3]
    %v208 = vlaneseq
    %v209 = vshrl.u32 %v208, 7
    %v210 = vsub.s32 0, %v209
    %v211 = vrot.slane %v206, %v210
    %v212 = vlaneseq
    %v213 = vshrl.u32 %v212, 7
    %v214 = vsub.s32 1, %v213
    %v215 = vrot.slane %v206, %v214
    %v250 = vunpack.c.l.b16 %v174
    %v251 = vunpack.c.h.b16 %v174
    %v252 = vunpack.c.l.b16 %v175
    %v253 = vunpack.c.h.b16 %v175
    %v254 = vunpack.c.l.b16 %v176
    %v255 = vunpack.c.h.b16 %v176
    %v256 = vunpack.c.l.b16 %v177
    %v257 = vunpack.c.h.b16 %v177
    %v258 = vunpack.c.l.b16 %v178
    %v259 = vunpack.c.h.b16 %v178
    %v260 = vunpack.c.l.b16 %v179
    %v261 = vunpack.c.h.b16 %v179
    %v262 = vunpack.c.l.b16 %v180
    %v263 = vunpack.c.h.b16 %v180
    %v264 = vunpack.c.l.b16 %v181
    %v265 = vunpack.c.h.b16 %v181
    %v266 = vunpack.c.l.b16 %v182
    %v267 = vunpack.c.h.b16 %v182
    %v268 = vunpack.c.l.b16 %v183
    %v269 = vunpack.c.h.b16 %v183
    %v270 = vunpack.c.l.b16 %v184
    %v271 = vunpack.c.h.b16 %v184
    %v272 = vunpack.c.l.b16 %v185
    %v273 = vunpack.c.h.b16 %v185
    %v274 = vunpack.c.l.b16 %v186
    %v275 = vunpack.c.h.b16 %v186
    %v276 = vunpack.c.l.b16 %v187
    %v277 = vunpack.c.h.b16 %v187
    %v278 = vunpack.c.l.b16 %v188
    %v279 = vunpack.c.h.b16 %v188
    %v280 = vunpack.c.l.b16 %v189
    %v281 = vunpack.c.h.b16 %v189
    %v282 = vunpack.c.l.b16 %v190
    %v283 = vunpack.c.h.b16 %v190
    %v284 = vunpack.c.l.b16 %v191
    %v285 = vunpack.c.h.b16 %v191
    %v286 = vunpack.c.l.b16 %v192
    %v287 = vunpack.c.h.b16 %v192
    %v288 = vunpack.c.l.b16 %v193
    %v289 = vunpack.c.h.b16 %v193
    %v290 = vunpack.c.l.b16 %v194
    %v291 = vunpack.c.h.b16 %v194
    %v292 = vunpack.c.l.b16 %v195
    %v293 = vunpack.c.h.b16 %v195
    %v294 = vunpack.c.l.b16 %v196
    %v295 = vunpack.c.h.b16 %v196
    %v296 = vunpack.c.l.b16 %v197
    %v297 = vunpack.c.h.b16 %v197
    %v298 = vunpack.c.l.b16 %v198
    %v299 = vunpack.c.h.b16 %v198
    %v300 = vunpack.c.l.b16 %v199
    %v301 = vunpack.c.h.b16 %v199
    %v302 = vunpack.c.l.b16 %v200
    %v303 = vunpack.c.h.b16 %v200
    %v304 = vunpack.c.l.b16 %v201
    %v305 = vunpack.c.h.b16 %v201
    %v306 = vunpack.c.l.b16 %v202
    %v307 = vunpack.c.h.b16 %v202
    %v308 = vunpack.c.l.b16 %v203
    %v309 = vunpack.c.h.b16 %v203
    %v310 = vunpack.c.l.b16 %v204
    %v311 = vunpack.c.h.b16 %v204
    %v312 = vunpack.c.l.b16 %v205
    %v313 = vunpack.c.h.b16 %v205
    %v314 = vpack.c.b16 %v252, %v250
    %v315 = vpack.c.b16 %v253, %v251
    %v316 = vpack.c.b16 %v256, %v254
    %v317 = vpack.c.b16 %v257, %v255
    %v318 = vpack.c.b16 %v260, %v258
    %v319 = vpack.c.b16 %v261, %v259
    %v320 = vpack.c.b16 %v264, %v262
    %v321 = vpack.c.b16 %v265, %v263
    %v322 = vpack.c.b16 %v268, %v266
    %v323 = vpack.c.b16 %v269, %v267
    %v324 = vpack.c.b16 %v272, %v270
    %v325 = vpack.c.b16 %v273, %v271
    %v326 = vpack.c.b16 %v276, %v274
    %v327 = vpack.c.b16 %v277, %v275
    %v328 = vpack.c.b16 %v280, %v278
    %v329 = vpack.c.b16 %v281, %v279
    %v330 = vpack.c.b16 %v284, %v282
    %v331 = vpack.c.b16 %v285, %v283
    %v332 = vpack.c.b16 %v288, %v286
    %v333 = vpack.c.b16 %v289, %v287
    %v334 = vpack.c.b16 %v292, %v290
    %v335 = vpack.c.b16 %v293, %v291
    %v336 = vpack.c.b16 %v296, %v294
    %v337 = vpack.c.b16 %v297, %v295
    %v338 = vpack.c.b16 %v300, %v298
    %v339 = vpack.c.b16 %v301, %v299
    %v340 = vpack.c.b16 %v304, %v302
    %v341 = vpack.c.b16 %v305, %v303
    %v342 = vpack.c.b16 %v308, %v306
    %v343 = vpack.c.b16 %v309, %v307
    %v344 = vpack.c.b16 %v312, %v310
    %v345 = vpack.c.b16 %v313, %v311
    %378 = vmatprep.subr.bf16.mxu0 %v315
    %379 = vmatpush1.bf16.msra.mxu0 %v314
    %380 = vmatprep.subr.bf16.mxu0 %v317
    %381 = vmatpush1.bf16.msra.mxu0 %v316
    %382 = vmatprep.subr.bf16.mxu0 %v319
    %383 = vmatpush1.bf16.msra.mxu0 %v318
    %384 = vmatprep.subr.bf16.mxu0 %v321
    %385 = vmatpush1.bf16.msra.mxu0 %v320
    %386 = vmatprep.subr.bf16.mxu0 %v323
    %387 = vmatpush1.bf16.msra.mxu0 %v322
    %388 = vmatprep.subr.bf16.mxu0 %v325
    %389 = vmatpush1.bf16.msra.mxu0 %v324
    %390 = vmatprep.subr.bf16.mxu0 %v327
    %391 = vmatpush1.bf16.msra.mxu0 %v326
    %392 = vmatprep.subr.bf16.mxu0 %v329
    %393 = vmatpush1.bf16.msra.mxu0 %v328
    %394 = vmatprep.subr.bf16.mxu0 %v331
    %395 = vmatpush1.bf16.msra.mxu0 %v330
    %396 = vmatprep.subr.bf16.mxu0 %v333
    %397 = vmatpush1.bf16.msra.mxu0 %v332
    %398 = vmatprep.subr.bf16.mxu0 %v335
    %399 = vmatpush1.bf16.msra.mxu0 %v334
    %400 = vmatprep.subr.bf16.mxu0 %v337
    %401 = vmatpush1.bf16.msra.mxu0 %v336
    %402 = vmatprep.subr.bf16.mxu0 %v339
    %403 = vmatpush1.bf16.msra.mxu0 %v338
    %404 = vmatprep.subr.bf16.mxu0 %v341
    %405 = vmatpush1.bf16.msra.mxu0 %v340
    %406 = vmatprep.subr.bf16.mxu0 %v343
    %407 = vmatpush1.bf16.msra.mxu0 %v342
    %408 = vmatprep.subr.bf16.mxu0 %v345
    %409 = vmatpush1.bf16.msra.mxu0 %v344
    %410 = vmatprep.mubr.bf16.mxu0 %v173
    %411 = vmatmul.mubr.bf16.gmra.mrb[0].mxu0 %v172
    %v412 = vpop.f32.mrb[0].mxu0
    %v413 = vadd.f32 %v211, %v412
    %v414 = vpop.f32.mrb[0].mxu0
    %v415 = vadd.f32 %v215, %v414
    %v416 = vpop.f32.mrb[0].mxu0
    %v417 = vpop.f32.mrb[0].mxu0
    %418 = vdwg.mxu0
    %v419 = vmax.f32 %v413, 0.0
    %v420 = vmax.f32 %v415, 0.0
    %v421 = vpack.c.bf16 %v419, %v419
    %v422 = vpack.c.bf16 %v420, %v420
    %v423 = vld [vmem:[#allocation9] sm:$0xf]
    %v424 = vld [vmem:[#allocation9 + $0x4] sm:$0xf]
    %v425 = vld [vmem:[#allocation9 + $0x8] sm:$0xf]
    %v426 = vld [vmem:[#allocation9 + $0xc] sm:$0xf]
    %v427 = vld [vmem:[#allocation9 + $0x10] sm:$0xf]
    %v428 = vld [vmem:[#allocation9 + $0x14] sm:$0xf]
    %v429 = vld [vmem:[#allocation9 + $0x18] sm:$0xf]
    %v430 = vld [vmem:[#allocation9 + $0x1c] sm:$0xf]
    %v431 = vld [vmem:[#allocation9 + $0x20] sm:$0xf]
    %v432 = vld [vmem:[#allocation9 + $0x24] sm:$0xf]
    %v433 = vld [vmem:[#allocation9 + $0x28] sm:$0xf]
    %v434 = vld [vmem:[#allocation9 + $0x2c] sm:$0xf]
    %v435 = vld [vmem:[#allocation9 + $0x30] sm:$0xf]
    %v436 = vld [vmem:[#allocation9 + $0x34] sm:$0xf]
    %v437 = vld [vmem:[#allocation9 + $0x38] sm:$0xf]
    %v438 = vld [vmem:[#allocation9 + $0x3c] sm:$0xf]
    %v439 = vld [vmem:[#allocation9 + $0x40] sm:$0xf]
    %v440 = vld [vmem:[#allocation9 + $0x44] sm:$0xf]
    %v441 = vld [vmem:[#allocation9 + $0x48] sm:$0xf]
    %v442 = vld [vmem:[#allocation9 + $0x4c] sm:$0xf]
    %v443 = vld [vmem:[#allocation9 + $0x50] sm:$0xf]
    %v444 = vld [vmem:[#allocation9 + $0x54] sm:$0xf]
    %v445 = vld [vmem:[#allocation9 + $0x58] sm:$0xf]
    %v446 = vld [vmem:[#allocation9 + $0x5c] sm:$0xf]
    %v447 = vld [vmem:[#allocation9 + $0x60] sm:$0xf]
    %v448 = vld [vmem:[#allocation9 + $0x64] sm:$0xf]
    %v449 = vld [vmem:[#allocation9 + $0x68] sm:$0xf]
    %v450 = vld [vmem:[#allocation9 + $0x6c] sm:$0xf]
    %v451 = vld [vmem:[#allocation9 + $0x70] sm:$0xf]
    %v452 = vld [vmem:[#allocation9 + $0x74] sm:$0xf]
    %v453 = vld [vmem:[#allocation9 + $0x78] sm:$0xf]
    %v454 = vld [vmem:[#allocation9 + $0x7c] sm:$0xf]
    %v455 = vld [vmem:[%s6] sm:$0x1]
    %v457 = vlaneseq
    %v458 = vshrl.u32 %v457, 7
    %v459 = vsub.s32 0, %v458
    %v460 = vrot.slane %v455, %v459
    %v494 = vunpack.c.l.b16 %v423
    %v495 = vunpack.c.l.b16 %v424
    %v496 = vunpack.c.l.b16 %v425
    %v497 = vunpack.c.l.b16 %v426
    %v498 = vunpack.c.l.b16 %v427
    %v499 = vunpack.c.l.b16 %v428
    %v500 = vunpack.c.l.b16 %v429
    %v501 = vunpack.c.l.b16 %v430
    %v502 = vunpack.c.l.b16 %v431
    %v503 = vunpack.c.l.b16 %v432
    %v504 = vunpack.c.l.b16 %v433
    %v505 = vunpack.c.l.b16 %v434
    %v506 = vunpack.c.l.b16 %v435
    %v507 = vunpack.c.l.b16 %v436
    %v508 = vunpack.c.l.b16 %v437
    %v509 = vunpack.c.l.b16 %v438
    %v510 = vunpack.c.l.b16 %v439
    %v511 = vunpack.c.l.b16 %v440
    %v512 = vunpack.c.l.b16 %v441
    %v513 = vunpack.c.l.b16 %v442
    %v514 = vunpack.c.l.b16 %v443
    %v515 = vunpack.c.l.b16 %v444
    %v516 = vunpack.c.l.b16 %v445
    %v517 = vunpack.c.l.b16 %v446
    %v518 = vunpack.c.l.b16 %v447
    %v519 = vunpack.c.l.b16 %v448
    %v520 = vunpack.c.l.b16 %v449
    %v521 = vunpack.c.l.b16 %v450
    %v522 = vunpack.c.l.b16 %v451
    %v523 = vunpack.c.l.b16 %v452
    %v524 = vunpack.c.l.b16 %v453
    %v525 = vunpack.c.l.b16 %v454
    %v526 = vpack.c.b16 %v495, %v494
    %v527 = vpack.c.b16 %v497, %v496
    %v528 = vpack.c.b16 %v499, %v498
    %v529 = vpack.c.b16 %v501, %v500
    %v530 = vpack.c.b16 %v503, %v502
    %v531 = vpack.c.b16 %v505, %v504
    %v532 = vpack.c.b16 %v507, %v506
    %v533 = vpack.c.b16 %v509, %v508
    %v534 = vpack.c.b16 %v511, %v510
    %v535 = vpack.c.b16 %v513, %v512
    %v536 = vpack.c.b16 %v515, %v514
    %v537 = vpack.c.b16 %v517, %v516
    %v538 = vpack.c.b16 %v519, %v518
    %v539 = vpack.c.b16 %v521, %v520
    %v540 = vpack.c.b16 %v523, %v522
    %v541 = vpack.c.b16 %v525, %v524
    %558 = vmatprep.subr.bf16.mxu0 0
    %559 = vmatpush1.bf16.msra.mxu0 %v526
    %560 = vmatprep.subr.bf16.mxu0 0
    %561 = vmatpush1.bf16.msra.mxu0 %v527
    %562 = vmatprep.subr.bf16.mxu0 0
    %563 = vmatpush1.bf16.msra.mxu0 %v528
    %564 = vmatprep.subr.bf16.mxu0 0
    %565 = vmatpush1.bf16.msra.mxu0 %v529
    %566 = vmatprep.subr.bf16.mxu0 0
    %567 = vmatpush1.bf16.msra.mxu0 %v530
    %568 = vmatprep.subr.bf16.mxu0 0
    %569 = vmatpush1.bf16.msra.mxu0 %v531
    %570 = vmatprep.subr.bf16.mxu0 0
    %571 = vmatpush1.bf16.msra.mxu0 %v532
    %572 = vmatprep.subr.bf16.mxu0 0
    %573 = vmatpush1.bf16.msra.mxu0 %v533
    %574 = vmatprep.subr.bf16.mxu0 0
    %575 = vmatpush1.bf16.msra.mxu0 %v534
    %576 = vmatprep.subr.bf16.mxu0 0
    %577 = vmatpush1.bf16.msra.mxu0 %v535
    %578 = vmatprep.subr.bf16.mxu0 0
    %579 = vmatpush1.bf16.msra.mxu0 %v536
    %580 = vmatprep.subr.bf16.mxu0 0
    %581 = vmatpush1.bf16.msra.mxu0 %v537
    %582 = vmatprep.subr.bf16.mxu0 0
    %583 = vmatpush1.bf16.msra.mxu0 %v538
    %584 = vmatprep.subr.bf16.mxu0 0
    %585 = vmatpush1.bf16.msra.mxu0 %v539
    %586 = vmatprep.subr.bf16.mxu0 0
    %587 = vmatpush1.bf16.msra.mxu0 %v540
    %588 = vmatprep.subr.bf16.mxu0 0
    %589 = vmatpush1.bf16.msra.mxu0 %v541
    %590 = vmatprep.mubr.bf16.mxu0 %v422
    %591 = vmatmul.mubr.bf16.gmra.mrb[0].mxu0 %v421
    %v592 = vpop.f32.mrb[0].mxu0
    %v593 = vadd.f32 %v460, %v592
    %v594 = vpop.f32.mrb[0].mxu0
    %v595 = vpop.f32.mrb[0].mxu0
    %v596 = vpop.f32.mrb[0].mxu0
    %597 = vdwg.mxu0
    %s598 = smul.u32 0, 8
    %v599 = vlaneseq
    %v600 = vshrl.u32 %v599, 7
    %v601 = vstv %s598
    %v602 = vadd.s32 %v601, %v600
    %vm603 = vcmp.lt.s32.totalorder %v602, 8
    %v604 = vsel %vm603, 1, 0
    %vm605 = vcmp.eq.s32.totalorder %v604, 1
    %v606 = vsel %vm605, %v593, 0.0
    %v607 = vld [vmem:[#allocation2] sm:$0x1]
    %vm608 = vcmask 23552
    %v609 = vsel %vm608, %v606, 0.0
    %610 = vadd.xlane.f32.xlu0 %v609
    %v611 = vpop.xlane.xlu0 %610
    %v612 = vrot.slane %v611, 4
    %v613 = vadd.f32 %v611, %v612
    %v614 = vrot.slane %v613, 2
    %v615 = vadd.f32 %v613, %v614
    %v616 = vrot.slane %v615, 1
    %v617 = vadd.f32 %v615, %v616
    %s618 = vtos %v617
    %v619 = vstv %s618
    %v620 = vadd.f32 %v607, %v619
    %vm621 = vcmask 0
    %622 = vst.msk [vmem:[#allocation2] sm:$0x1] %vm621, %v620
    %624 = vset.pattern.permute.xlu0 3
    %625 = vperm.xlu0 %624, %v593
    %v626 = vpop.permute.xlu0 %625
    %v628 = vadd.f32 %v593, %v626
    %s629 = scalar_lea.vmem [#allocation11], %s598
    %630 = vst [vmem:[%s629] sm:$0xff] %v628
    // Predicated region
    $region50: #{tpu_custom_call.1} parent=1 // pred_check
      %p631 = pneg %p81
    $region51: #{tpu_custom_call.1} parent=1 // pred_check_branch
      %633 = sbr.rel (%p631) target = $region53
    $region52: #{tpu_custom_call.1} parent=1 // pred_region
      %v634 = vld [vmem:[#allocation2] sm:$0x1]
      %v635 = vmul.f32 %v634, 0.041666668
      %v636 = vld [vmem:[#allocation11] sm:$0xff]
      %v638 = vlaneseq
      %v639 = vshrl.u32 %v638, 7
      %v640 = vsub.s32 0, %v639
      %v641 = vrot.slane %v635, %v640
      %642 = vset.pattern.permute.xlu0 0
      %643 = vperm.xlu0 %642, %v641
      %v644 = vpop.permute.xlu0 %643
      %v646 = vsub.f32 %v636, %v644
      %647 = vst [vmem:[#allocation11] sm:$0xff] %v646
    $region53: #{tpu_custom_call.1} parent=1 // pred_fallthru
      _
    // Predicated region
    $region54: #{tpu_custom_call.1} parent=1 // pred_check
      _
    $region55: #{tpu_custom_call.1} parent=1 // pred_check_branch
      %649 = sbr.rel (0) target = $region57
    $region56: #{tpu_custom_call.1} parent=1 // pred_region
      %s651 = ssub.s32 128, 128
      %652 = vsyncadd [#allocation5], %s651
      %s654 = sshll.u32 [#allocation11], 4
      %s655 = int_to_ptr.vmem [resolvable:$true] %s654
      %657 = dma.vmem_to_hbm [thread:$0]  %s655, 128, %s7, [#allocation5]
    $region57: #{tpu_custom_call.1} parent=1 // pred_fallthru
      _
    // Predicated region
    $region58: #{tpu_custom_call.1} parent=1 // pred_check
      _
    $region59: #{tpu_custom_call.1} parent=1 // pred_check_branch
      %659 = sbr.rel (0) target = $region61
    $region60: #{tpu_custom_call.1} parent=1 // pred_region
      %660 = dma.done [#allocation5], 128
    $region61: #{tpu_custom_call.1} parent=1 // pred_fallthru
      _
    %661 = vsyncpa [#allocation4], 1
    %662 = vsyncpa [#allocation7], 1
    %663 = vsyncpa [#allocation10], 1
    %664 = vsyncpa [#allocation5], 1

</llo_original>
